<compile_context>
chip_gen: v7x
topology: tpu7x:2x2x1
jax: 0.10.0
libtpu: 0.0.40
codegen_flags: <defaults>
</compile_context>

<pallas_src>
import functools

import jax
import jax.numpy as jnp
from jax import lax
from jax.experimental import pallas as pl
from jax.experimental.pallas import tpu as pltpu

EPS = 1e-5


def cnn_block_kernel(x_ref, w_ref, p_ref, gamma_ref, beta_ref, out_ref, *,
                     inv_count):
    # x_ref:     (M, Kpad)        M = N*H, Kpad = round_up(3*Wp*Cin, 128)
    # w_ref:     (Kpad, W*Cout)   banded conv weight, zero-padded K rows
    # p_ref:     (W*Cout, W*Cout) P[w*Cout+c, w'*Cout+c'] = (c == c')
    # gamma_ref: (1, W*Cout)      per-channel gamma spread over lane groups
    # beta_ref:  (1, W*Cout)      per-channel beta  spread over lane groups
    # out_ref:   (M, W*Cout)      lane-dense output slab
    # inv_count: 1 / (N*H*W), baked at trace time.

    # --- Conv: one dense MXU matmul (all 9 taps folded into K / banded N).
    acc = jnp.dot(x_ref[...], w_ref[...],
                  preferred_element_type=jnp.float32)            # (M, W*Cout)

    # --- BatchNorm2d (train mode): single-pass stats.  One MXU matmul folds
    # the per-lane sums into per-channel totals AND spreads them back across
    # the W lane groups (P is the fold@spread product).
    col_stats = jnp.concatenate(
        [jnp.sum(acc, axis=0, keepdims=True),
         jnp.sum(acc * acc, axis=0, keepdims=True)], axis=0)      # (2, W*Cout)
    ch_stats = jnp.dot(col_stats, p_ref[...],
                       preferred_element_type=jnp.float32) * inv_count
    mean_l = ch_stats[0:1, :]                                     # (1, W*Cout)
    var_l = ch_stats[1:2, :] - mean_l * mean_l                    # biased var
    scale_l = gamma_ref[...] * lax.rsqrt(var_l + EPS)             # (1, W*Cout)
    shift_l = beta_ref[...] - mean_l * scale_l                    # (1, W*Cout)

    # --- Fused BN affine + ReLU, one unmasked lane-dense store.
    out_ref[...] = jnp.maximum(acc * scale_l + shift_l, 0.0
                               ).astype(out_ref.dtype)


def cnn_block_nhwc(x_nhwc, w_oihw, bias, gamma, beta):
    """Transpose-free hot path: (N, H, W, Cin) f32 -> (N, H, W, Cout) f32."""
    N, H, W, Cin = x_nhwc.shape
    Cout = w_oihw.shape[0]
    Hp, Wp = H + 2, W + 2
    K = 3 * Wp * Cin
    Kpad = ((K + 127) // 128) * 128

    # Conv bias is not used: with train-mode BatchNorm directly after,
    # (y + b) - mean(y + b) == y - mean(y), so it cancels exactly.
    # TODO(synk): BatchNorm running_mean/running_var buffer updates (which do
    # see the bias and use unbiased var) are not reproduced; forward output is
    # unaffected.
    del bias

    # ---- Activation packing: pad + stack the 3 ky-shifted row slabs so the
    # kernel sees one dense (N*H, Kpad) operand (no in-kernel slices/reshapes).
    x_pad = jnp.pad(x_nhwc.astype(jnp.float32),
                    ((0, 0), (1, 1), (1, 1), (0, 0)))
    x_rows = x_pad.reshape(N, Hp, Wp * Cin)
    x_stack = jnp.concatenate([x_rows[:, ky:ky + H, :] for ky in range(3)],
                              axis=-1).reshape(N * H, K)
    x_stack = jnp.pad(x_stack, ((0, 0), (0, Kpad - K)))

    # ---- Banded conv weight, flattened over ky and zero-padded to Kpad:
    # w_band[ky*Wp*Cin + xp*Cin + ci, x*Cout + co] = w[co, ci, ky, xp - x]
    # for xp - x in {0, 1, 2}, else 0.
    w_hwio = jnp.transpose(w_oihw, (2, 3, 1, 0)).astype(jnp.float32)  # (3,3,Ci,Co)
    sel = (jnp.arange(Wp)[None, :, None] ==
           (jnp.arange(W)[None, None, :] + jnp.arange(3)[:, None, None])
           ).astype(jnp.float32)                                  # (3, Wp, W)
    w_band = jnp.einsum('kpx,ykio->ypixo', sel, w_hwio)           # (3,Wp,Ci,W,Co)
    w_band = w_band.reshape(K, W * Cout)
    w_band = jnp.pad(w_band, ((0, Kpad - K), (0, 0)))

    # ---- Channel-averaging matrix (fold @ spread) and lane-spread gamma/beta.
    pmat = jnp.kron(jnp.ones((W, W), jnp.float32),
                    jnp.eye(Cout, dtype=jnp.float32))             # (W*Co, W*Co)
    gamma_l = jnp.tile(gamma.astype(jnp.float32), W).reshape(1, W * Cout)
    beta_l = jnp.tile(beta.astype(jnp.float32), W).reshape(1, W * Cout)

    inv_count = 1.0 / float(N * H * W)
    vmem = pl.BlockSpec(memory_space=pltpu.MemorySpace.VMEM)
    # TODO(synk): for large N*H (esp. v7x 2-TC / VMEM limits), add a row-tile
    # grid with dimension_semantics=("parallel",) and a cross-tile BN-stats
    # reduction; at this size a single un-gridded call is optimal.
    out_slab = pl.pallas_call(
        functools.partial(cnn_block_kernel, inv_count=inv_count),
        out_shape=jax.ShapeDtypeStruct((N * H, W * Cout), jnp.float32),
        in_specs=[vmem] * 5,
        out_specs=vmem,
    )(x_stack, w_band, pmat, gamma_l, beta_l)

    # (N*H, W*Cout) -> (N, H, W, Cout): free view, no HBM transpose.
    return out_slab.reshape(N, H, W, Cout)


def cnn_block(x_nchw, w_oihw, bias, gamma, beta):
    """Drop-in NCHW interface matching the PyTorch module (pays 2 transposes)."""
    x_nhwc = jnp.transpose(x_nchw, (0, 2, 3, 1))
    out_nhwc = cnn_block_nhwc(x_nhwc, w_oihw, bias, gamma, beta)
    return jnp.transpose(out_nhwc, (0, 3, 1, 2))


def reference(x, w, b, gamma, beta):
    """Plain-JAX reference matching the PyTorch CnnBlock forward (train mode)."""
    y = lax.conv_general_dilated(
        x, w, window_strides=(1, 1), padding=((1, 1), (1, 1)),
        dimension_numbers=("NCHW", "OIHW", "NCHW"))
    y = y + b[None, :, None, None]
    mean = jnp.mean(y, axis=(0, 2, 3), keepdims=True)
    var = jnp.mean((y - mean) ** 2, axis=(0, 2, 3), keepdims=True)
    yhat = (y - mean) / jnp.sqrt(var + EPS)
    y = yhat * gamma[None, :, None, None] + beta[None, :, None, None]
    return jnp.maximum(y, 0.0)


if __name__ == "__main__":
    N, C_IN, C_OUT, H, W = 2, 4, 8, 16, 16

    key = jax.random.PRNGKey(0)
    kx, kw, kb = jax.random.split(key, 3)

    x = jax.random.normal(kx, (N, C_IN, H, W), dtype=jnp.float32)

    # Deterministic init mimicking PyTorch Conv2d defaults (kaiming_uniform):
    fan_in = C_IN * 3 * 3
    bound = 1.0 / (fan_in ** 0.5)
    w = jax.random.uniform(kw, (C_OUT, C_IN, 3, 3), jnp.float32, -bound, bound)
    b = jax.random.uniform(kb, (C_OUT,), jnp.float32, -bound, bound)
    # BatchNorm2d default params: gamma=1, beta=0.
    gamma = jnp.ones((C_OUT,), jnp.float32)
    beta = jnp.zeros((C_OUT,), jnp.float32)

    ref = jax.block_until_ready(reference(x, w, b, gamma, beta))

    # Transpose-free NHWC hot path.
    out_nhwc = jax.block_until_ready(
        cnn_block_nhwc(jnp.transpose(x, (0, 2, 3, 1)), w, b, gamma, beta))
    assert out_nhwc.shape == (N, H, W, C_OUT)
    assert jnp.allclose(jnp.transpose(out_nhwc, (0, 3, 1, 2)), ref,
                        atol=1e-4, rtol=1e-4), float(
        jnp.max(jnp.abs(jnp.transpose(out_nhwc, (0, 3, 1, 2)) - ref)))

    # Drop-in NCHW wrapper (matches the PyTorch module layout).
    out_nchw = jax.block_until_ready(cnn_block(x, w, b, gamma, beta))
    assert out_nchw.shape == (N, C_OUT, H, W)
    assert jnp.allclose(out_nchw, ref, atol=1e-4, rtol=1e-4), float(
        jnp.max(jnp.abs(out_nchw - ref)))

    print("KERNEL_OK")
</pallas_src>

<mosaic_0001>
module attributes {stable_mosaic.version = 11 : i64} {
  func.func @cnn_block_kernel(%arg0: memref<32x256xf32, #tpu.memory_space<vmem>>, %arg1: memref<256x128xf32, #tpu.memory_space<vmem>>, %arg2: memref<128x128xf32, #tpu.memory_space<vmem>>, %arg3: memref<1x128xf32, #tpu.memory_space<vmem>>, %arg4: memref<1x128xf32, #tpu.memory_space<vmem>>, %arg5: memref<32x128xf32, #tpu.memory_space<vmem>>) attributes {dimension_semantics = [], scalar_prefetch = 0 : i64, scratch_operands = 0 : i64, tpu.core_type = #tpu.core_type<tc>} {
    %c0 = arith.constant 0 : index
    %c0_0 = arith.constant 0 : index
    %0 = vector.load %arg0[%c0, %c0_0] : memref<32x256xf32, #tpu.memory_space<vmem>>, vector<32x256xf32>
    %c0_1 = arith.constant 0 : index
    %c0_2 = arith.constant 0 : index
    %1 = vector.load %arg1[%c0_1, %c0_2] : memref<256x128xf32, #tpu.memory_space<vmem>>, vector<256x128xf32>
    %cst = arith.constant dense<0.000000e+00> : vector<32x128xf32>
    %2 = tpu.matmul %0, %1, %cst {dimension_numbers = #tpu.dot_dimension_numbers<[1], [0], [0], [1], [0, 0, 1, 1], [], []>} : vector<32x256xf32>, vector<256x128xf32>, vector<32x128xf32> -> vector<32x128xf32>
    %cst_3 = arith.constant dense<0.000000e+00> : vector<128xf32>
    %3 = vector.multi_reduction <add>, %2, %cst_3 [0] : vector<32x128xf32> to vector<128xf32>
    %4 = vector.shape_cast %3 : vector<128xf32> to vector<1x128xf32>
    %5 = arith.mulf %2, %2 : vector<32x128xf32>
    %cst_4 = arith.constant dense<0.000000e+00> : vector<128xf32>
    %6 = vector.multi_reduction <add>, %5, %cst_4 [0] : vector<32x128xf32> to vector<128xf32>
    %7 = vector.shape_cast %6 : vector<128xf32> to vector<1x128xf32>
    %8 = tpu.concatenate %4, %7 in 0 : vector<1x128xf32>, vector<1x128xf32> -> vector<2x128xf32>
    %c0_5 = arith.constant 0 : index
    %c0_6 = arith.constant 0 : index
    %9 = vector.load %arg2[%c0_5, %c0_6] : memref<128x128xf32, #tpu.memory_space<vmem>>, vector<128x128xf32>
    %cst_7 = arith.constant dense<0.000000e+00> : vector<2x128xf32>
    %10 = tpu.matmul %8, %9, %cst_7 {dimension_numbers = #tpu.dot_dimension_numbers<[1], [0], [0], [1], [0, 0, 1, 1], [], []>} : vector<2x128xf32>, vector<128x128xf32>, vector<2x128xf32> -> vector<2x128xf32>
    %cst_8 = arith.constant 0.001953125 : f32
    %11 = vector.broadcast %cst_8 : f32 to vector<2x128xf32>
    %12 = arith.mulf %10, %11 : vector<2x128xf32>
    %13 = vector.extract_strided_slice %12 {offsets = [0, 0], sizes = [1, 128], strides = [1, 1]} : vector<2x128xf32> to vector<1x128xf32>
    %14 = vector.extract_strided_slice %12 {offsets = [1, 0], sizes = [1, 128], strides = [1, 1]} : vector<2x128xf32> to vector<1x128xf32>
    %15 = arith.mulf %13, %13 : vector<1x128xf32>
    %16 = arith.subf %14, %15 : vector<1x128xf32>
    %c0_9 = arith.constant 0 : index
    %c0_10 = arith.constant 0 : index
    %17 = vector.load %arg3[%c0_9, %c0_10] : memref<1x128xf32, #tpu.memory_space<vmem>>, vector<1x128xf32>
    %cst_11 = arith.constant 9.99999974E-6 : f32
    %18 = vector.broadcast %cst_11 : f32 to vector<1x128xf32>
    %19 = arith.addf %16, %18 : vector<1x128xf32>
    %20 = math.rsqrt %19 : vector<1x128xf32>
    %21 = arith.mulf %17, %20 : vector<1x128xf32>
    %c0_12 = arith.constant 0 : index
    %c0_13 = arith.constant 0 : index
    %22 = vector.load %arg4[%c0_12, %c0_13] : memref<1x128xf32, #tpu.memory_space<vmem>>, vector<1x128xf32>
    %23 = arith.mulf %13, %21 : vector<1x128xf32>
    %24 = arith.subf %22, %23 : vector<1x128xf32>
    %25 = vector.broadcast %21 : vector<1x128xf32> to vector<32x128xf32>
    %26 = arith.mulf %2, %25 : vector<32x128xf32>
    %27 = vector.broadcast %24 : vector<1x128xf32> to vector<32x128xf32>
    %28 = arith.addf %26, %27 : vector<32x128xf32>
    %cst_14 = arith.constant 0.000000e+00 : f32
    %29 = vector.broadcast %cst_14 : f32 to vector<32x128xf32>
    %30 = arith.maximumf %28, %29 : vector<32x128xf32>
    %c0_15 = arith.constant 0 : index
    %c0_16 = arith.constant 0 : index
    %31 = vector.load %arg5[%c0_15, %c0_16] : memref<32x128xf32, #tpu.memory_space<vmem>>, vector<32x128xf32>
    tpu.vector_store %arg5[%c0_15, %c0_16], %30 {strides = array<i32>} : memref<32x128xf32, #tpu.memory_space<vmem>>, vector<32x128xf32>,
    return
  }
}

</mosaic_0001>

<llo_original>
// kernel: tpu_custom_call.1
$region0: #{tpu_custom_call.1}
  #allocation0 [shape = 'u32[]', space=smem, size = 0x4, offset = 0x4, fixed_abs, tag = 'smem constant byte address 0x4 - core index']
  #allocation1 [shape = 'u32[144,128]{1,0:T(1,128)}', space=vmem, size = 0x12000, scoped, tag = 'internal scratch']
  %s0 = inlined_call_operand.hbm [shape: f32[32,256], index: 0, kind: input, shape index: {}]
  %s1 = inlined_call_operand.hbm [shape: f32[256,128], index: 1, kind: input, shape index: {}]
  %s2 = inlined_call_operand.hbm [shape: f32[128,128], index: 2, kind: input, shape index: {}]
  %s3 = inlined_call_operand.vmem [shape: f32[1,128], index: 3, kind: input, shape index: {}]
  %s4 = inlined_call_operand.vmem [shape: f32[1,128], index: 4, kind: input, shape index: {}]
  %s5 = inlined_call_operand.hbm [shape: f32[32,128], index: 5, kind: output, shape index: {}]
  %s6 = sld [smem:[#allocation0]]
  $region42: #{tpu_custom_call.1} parent=0
    _
  %s8 = ssub.s32 1, %s6
  %s9 = scalar_select 0, %s8, %s6
  $region1: #{tpu_custom_call.1} parent=0
    #allocation2 [shape = 'u8[32768]{0}', space=vmem, size = 0x8000, scoped, tag = 'input window, operand 0, single buffered']
    #allocation3 [shape = 's32[1]{0}', space=sflag, size = 0x4, scoped, tag = 'scoped memory for tpu_custom_call.1']
    #allocation4 [shape = 's32[1]{0}', space=sflag, size = 0x4, scoped, tag = 'scoped memory for tpu_custom_call.1']
    #allocation5 [shape = 'u8[131072]{0}', space=vmem, size = 0x20000, scoped, tag = 'input window, operand 1, single buffered']
    #allocation6 [shape = 's32[1]{0}', space=sflag, size = 0x4, scoped, tag = 'scoped memory for tpu_custom_call.1']
    #allocation7 [shape = 'u8[65536]{0}', space=vmem, size = 0x10000, scoped, tag = 'input window, operand 2, single buffered']
    #allocation8 [shape = 'u8[16384]{0}', space=vmem, size = 0x4000, scoped, tag = 'output window, operand 0, single buffered']
    %10 = vsyncpa [#allocation3], 0
    %11 = vsyncpa [#allocation6], 0
    %12 = vsyncpa [#allocation4], 0
    // Predicated region
    $region2: #{tpu_custom_call.1} parent=1 // pred_check
      _
    $region3: #{tpu_custom_call.1} parent=1 // pred_check_branch
      %14 = sbr.rel (0) target = $region5
    $region4: #{tpu_custom_call.1} parent=1 // pred_region
      %s16 = ssub.s32 1024, 1024
      %17 = vsyncadd [#allocation3], %s16
      %s18 = sshll.u32 [#allocation2], 4
      %s19 = int_to_ptr.vmem [resolvable:$true] %s18
      %24 = dma.hbm_to_vmem [thread:$0]  %s0, 1024, %s19, [#allocation3], 256, 256, 16
    $region5: #{tpu_custom_call.1} parent=1 // pred_fallthru
      _
    // Predicated region
    $region6: #{tpu_custom_call.1} parent=1 // pred_check
      _
    $region7: #{tpu_custom_call.1} parent=1 // pred_check_branch
      %26 = sbr.rel (0) target = $region9
    $region8: #{tpu_custom_call.1} parent=1 // pred_region
      %s28 = ssub.s32 4096, 4096
      %29 = vsyncadd [#allocation6], %s28
      %s30 = sshll.u32 [#allocation5], 4
      %s31 = int_to_ptr.vmem [resolvable:$true] %s30
      %36 = dma.hbm_to_vmem [thread:$0]  %s1, 4096, %s31, [#allocation6], 128, 128, 8
    $region9: #{tpu_custom_call.1} parent=1 // pred_fallthru
      _
    // Predicated region
    $region10: #{tpu_custom_call.1} parent=1 // pred_check
      _
    $region11: #{tpu_custom_call.1} parent=1 // pred_check_branch
      %38 = sbr.rel (0) target = $region13
    $region12: #{tpu_custom_call.1} parent=1 // pred_region
      %s40 = ssub.s32 2048, 2048
      %41 = vsyncadd [#allocation6], %s40
      %s42 = sshll.u32 [#allocation7], 4
      %s43 = int_to_ptr.vmem [resolvable:$true] %s42
      %48 = dma.hbm_to_vmem [thread:$0]  %s2, 2048, %s43, [#allocation6], 128, 128, 8
    $region13: #{tpu_custom_call.1} parent=1 // pred_fallthru
      _
    // Predicated region
    $region14: #{tpu_custom_call.1} parent=1 // pred_check
      _
    $region15: #{tpu_custom_call.1} parent=1 // pred_check_branch
      %50 = sbr.rel (0) target = $region17
    $region16: #{tpu_custom_call.1} parent=1 // pred_region
      _
    $region17: #{tpu_custom_call.1} parent=1 // pred_fallthru
      _
    // Predicated region
    $region18: #{tpu_custom_call.1} parent=1 // pred_check
      _
    $region19: #{tpu_custom_call.1} parent=1 // pred_check_branch
      %52 = sbr.rel (0) target = $region21
    $region20: #{tpu_custom_call.1} parent=1 // pred_region
      _
    $region21: #{tpu_custom_call.1} parent=1 // pred_fallthru
      _
    // Predicated region
    $region22: #{tpu_custom_call.1} parent=1 // pred_check
      _
    $region23: #{tpu_custom_call.1} parent=1 // pred_check_branch
      %54 = sbr.rel (0) target = $region25
    $region24: #{tpu_custom_call.1} parent=1 // pred_region
      %55 = dma.done [#allocation3], 1024
    $region25: #{tpu_custom_call.1} parent=1 // pred_fallthru
      _
    // Predicated region
    $region26: #{tpu_custom_call.1} parent=1 // pred_check
      _
    $region27: #{tpu_custom_call.1} parent=1 // pred_check_branch
      %57 = sbr.rel (0) target = $region29
    $region28: #{tpu_custom_call.1} parent=1 // pred_region
      %58 = dma.done [#allocation6], 4096
    $region29: #{tpu_custom_call.1} parent=1 // pred_fallthru
      _
    // Predicated region
    $region30: #{tpu_custom_call.1} parent=1 // pred_check
      _
    $region31: #{tpu_custom_call.1} parent=1 // pred_check_branch
      %60 = sbr.rel (0) target = $region33
    $region32: #{tpu_custom_call.1} parent=1 // pred_region
      %61 = dma.done [#allocation6], 2048
    $region33: #{tpu_custom_call.1} parent=1 // pred_fallthru
      _
    %v62 = vld [vmem:[#allocation2] sm:$0xff]
    %v63 = vld [vmem:[#allocation2 + $0x8] sm:$0xff]
    %v64 = vld [vmem:[#allocation2 + $0x10] sm:$0xff]
    %v65 = vld [vmem:[#allocation2 + $0x18] sm:$0xff]
    %v66 = vld [vmem:[#allocation2 + $0x20] sm:$0xff]
    %v67 = vld [vmem:[#allocation2 + $0x28] sm:$0xff]
    %v68 = vld [vmem:[#allocation2 + $0x30] sm:$0xff]
    %v69 = vld [vmem:[#allocation2 + $0x38] sm:$0xff]
    %v70 = vld [vmem:[#allocation5] sm:$0xff]
    %v71 = vld [vmem:[#allocation5 + $0x8] sm:$0xff]
    %v72 = vld [vmem:[#allocation5 + $0x10] sm:$0xff]
    %v73 = vld [vmem:[#allocation5 + $0x18] sm:$0xff]
    %v74 = vld [vmem:[#allocation5 + $0x20] sm:$0xff]
    %v75 = vld [vmem:[#allocation5 + $0x28] sm:$0xff]
    %v76 = vld [vmem:[#allocation5 + $0x30] sm:$0xff]
    %v77 = vld [vmem:[#allocation5 + $0x38] sm:$0xff]
    %v78 = vld [vmem:[#allocation5 + $0x40] sm:$0xff]
    %v79 = vld [vmem:[#allocation5 + $0x48] sm:$0xff]
    %v80 = vld [vmem:[#allocation5 + $0x50] sm:$0xff]
    %v81 = vld [vmem:[#allocation5 + $0x58] sm:$0xff]
    %v82 = vld [vmem:[#allocation5 + $0x60] sm:$0xff]
    %v83 = vld [vmem:[#allocation5 + $0x68] sm:$0xff]
    %v84 = vld [vmem:[#allocation5 + $0x70] sm:$0xff]
    %v85 = vld [vmem:[#allocation5 + $0x78] sm:$0xff]
    %v86 = vld [vmem:[#allocation5 + $0x80] sm:$0xff]
    %v87 = vld [vmem:[#allocation5 + $0x88] sm:$0xff]
    %v88 = vld [vmem:[#allocation5 + $0x90] sm:$0xff]
    %v89 = vld [vmem:[#allocation5 + $0x98] sm:$0xff]
    %v90 = vld [vmem:[#allocation5 + $0xa0] sm:$0xff]
    %v91 = vld [vmem:[#allocation5 + $0xa8] sm:$0xff]
    %v92 = vld [vmem:[#allocation5 + $0xb0] sm:$0xff]
    %v93 = vld [vmem:[#allocation5 + $0xb8] sm:$0xff]
    %v94 = vld [vmem:[#allocation5 + $0xc0] sm:$0xff]
    %v95 = vld [vmem:[#allocation5 + $0xc8] sm:$0xff]
    %v96 = vld [vmem:[#allocation5 + $0xd0] sm:$0xff]
    %v97 = vld [vmem:[#allocation5 + $0xd8] sm:$0xff]
    %v98 = vld [vmem:[#allocation5 + $0xe0] sm:$0xff]
    %v99 = vld [vmem:[#allocation5 + $0xe8] sm:$0xff]
    %v100 = vld [vmem:[#allocation5 + $0xf0] sm:$0xff]
    %v101 = vld [vmem:[#allocation5 + $0xf8] sm:$0xff]
    %102 = vmatprep.subr.mxu0 0.0
    %103 = vmatpush1.msra.mxu0 %v70
    %104 = vmatprep.subr.mxu0 0.0
    %105 = vmatpush1.msra.mxu0 %v71
    %106 = vmatprep.subr.mxu0 0.0
    %107 = vmatpush1.msra.mxu0 %v72
    %108 = vmatprep.subr.mxu0 0.0
    %109 = vmatpush1.msra.mxu0 %v73
    %110 = vmatprep.subr.mxu0 0.0
    %111 = vmatpush1.msra.mxu0 %v74
    %112 = vmatprep.subr.mxu0 0.0
    %113 = vmatpush1.msra.mxu0 %v75
    %114 = vmatprep.subr.mxu0 0.0
    %115 = vmatpush1.msra.mxu0 %v76
    %116 = vmatprep.subr.mxu0 0.0
    %117 = vmatpush1.msra.mxu0 %v77
    %118 = vmatprep.subr.mxu0 0.0
    %119 = vmatpush1.msra.mxu0 %v78
    %120 = vmatprep.subr.mxu0 0.0
    %121 = vmatpush1.msra.mxu0 %v79
    %122 = vmatprep.subr.mxu0 0.0
    %123 = vmatpush1.msra.mxu0 %v80
    %124 = vmatprep.subr.mxu0 0.0
    %125 = vmatpush1.msra.mxu0 %v81
    %126 = vmatprep.subr.mxu0 0.0
    %127 = vmatpush1.msra.mxu0 %v82
    %128 = vmatprep.subr.mxu0 0.0
    %129 = vmatpush1.msra.mxu0 %v83
    %130 = vmatprep.subr.mxu0 0.0
    %131 = vmatpush1.msra.mxu0 %v84
    %132 = vmatprep.subr.mxu0 0.0
    %133 = vmatpush1.msra.mxu0 %v85
    %134 = vmatprep.subr.mxu0 0.0
    %135 = vmatpush1.msra.mxu0 %v86
    %136 = vmatprep.subr.mxu0 0.0
    %137 = vmatpush1.msra.mxu0 %v87
    %138 = vmatprep.subr.mxu0 0.0
    %139 = vmatpush1.msra.mxu0 %v88
    %140 = vmatprep.subr.mxu0 0.0
    %141 = vmatpush1.msra.mxu0 %v89
    %142 = vmatprep.subr.mxu0 0.0
    %143 = vmatpush1.msra.mxu0 %v90
    %144 = vmatprep.subr.mxu0 0.0
    %145 = vmatpush1.msra.mxu0 %v91
    %146 = vmatprep.subr.mxu0 0.0
    %147 = vmatpush1.msra.mxu0 %v92
    %148 = vmatprep.subr.mxu0 0.0
    %149 = vmatpush1.msra.mxu0 %v93
    %150 = vmatprep.subr.mxu0 0.0
    %151 = vmatpush1.msra.mxu0 %v94
    %152 = vmatprep.subr.mxu0 0.0
    %153 = vmatpush1.msra.mxu0 %v95
    %154 = vmatprep.subr.mxu0 0.0
    %155 = vmatpush1.msra.mxu0 %v96
    %156 = vmatprep.subr.mxu0 0.0
    %157 = vmatpush1.msra.mxu0 %v97
    %158 = vmatprep.subr.mxu0 0.0
    %159 = vmatpush1.msra.mxu0 %v98
    %160 = vmatprep.subr.mxu0 0.0
    %161 = vmatpush1.msra.mxu0 %v99
    %162 = vmatprep.subr.mxu0 0.0
    %163 = vmatpush1.msra.mxu0 %v100
    %164 = vmatprep.subr.mxu0 0.0
    %165 = vmatpush1.msra.mxu0 %v101
    %166 = vmatprep.mubr.f32.mxu0 %v63
    %167 = vmatmul.mubr.f32.gmra.mrb[0].mxu0 %v62
    %v168 = vpop.f32.mrb[0].mxu0
    %v169 = vadd.f32 0.0, %v168
    %v170 = vpop.f32.mrb[0].mxu0
    %171 = vmatprep.mubr.f32.mxu0 %v65
    %172 = vmatmul.mubr.f32.gmra.mrb[0].mxu0 %v64
    %v173 = vpop.f32.mrb[0].mxu0
    %v174 = vadd.f32 0.0, %v173
    %v175 = vpop.f32.mrb[0].mxu0
    %176 = vmatprep.mubr.f32.mxu0 %v67
    %177 = vmatmul.mubr.f32.gmra.mrb[0].mxu0 %v66
    %v178 = vpop.f32.mrb[0].mxu0
    %v179 = vadd.f32 0.0, %v178
    %v180 = vpop.f32.mrb[0].mxu0
    %181 = vmatprep.mubr.f32.mxu0 %v69
    %182 = vmatmul.mubr.f32.gmra.mrb[0].mxu0 %v68
    %v183 = vpop.f32.mrb[0].mxu0
    %v184 = vadd.f32 0.0, %v183
    %v185 = vpop.f32.mrb[0].mxu0
    %186 = vdwg.mxu0
    %v187 = vadd.f32 %v169, %v174
    %v188 = vadd.f32 %v187, %v179
    %v189 = vadd.f32 %v188, %v184
    %v190 = vrot.slane %v189, 4
    %v191 = vadd.f32 %v189, %v190
    %v192 = vrot.slane %v191, 2
    %v193 = vadd.f32 %v191, %v192
    %v194 = vrot.slane %v193, 1
    %v195 = vadd.f32 %v193, %v194
    %v196 = vmul.f32 %v169, %v169
    %v197 = vmul.f32 %v174, %v174
    %v198 = vmul.f32 %v179, %v179
    %v199 = vmul.f32 %v184, %v184
    %v200 = vadd.f32 %v196, %v197
    %v201 = vadd.f32 %v200, %v198
    %v202 = vadd.f32 %v201, %v199
    %v203 = vrot.slane %v202, 4
    %v204 = vadd.f32 %v202, %v203
    %v205 = vrot.slane %v204, 2
    %v206 = vadd.f32 %v204, %v205
    %v207 = vrot.slane %v206, 1
    %v208 = vadd.f32 %v206, %v207
    %vm209 = vcmask 1040384
    %v210 = vsel %vm209, %v195, %v208
    %v211 = vld [vmem:[#allocation7] sm:$0xff]
    %v212 = vld [vmem:[#allocation7 + $0x8] sm:$0xff]
    %v213 = vld [vmem:[#allocation7 + $0x10] sm:$0xff]
    %v214 = vld [vmem:[#allocation7 + $0x18] sm:$0xff]
    %v215 = vld [vmem:[#allocation7 + $0x20] sm:$0xff]
    %v216 = vld [vmem:[#allocation7 + $0x28] sm:$0xff]
    %v217 = vld [vmem:[#allocation7 + $0x30] sm:$0xff]
    %v218 = vld [vmem:[#allocation7 + $0x38] sm:$0xff]
    %v219 = vld [vmem:[#allocation7 + $0x40] sm:$0xff]
    %v220 = vld [vmem:[#allocation7 + $0x48] sm:$0xff]
    %v221 = vld [vmem:[#allocation7 + $0x50] sm:$0xff]
    %v222 = vld [vmem:[#allocation7 + $0x58] sm:$0xff]
    %v223 = vld [vmem:[#allocation7 + $0x60] sm:$0xff]
    %v224 = vld [vmem:[#allocation7 + $0x68] sm:$0xff]
    %v225 = vld [vmem:[#allocation7 + $0x70] sm:$0xff]
    %v226 = vld [vmem:[#allocation7 + $0x78] sm:$0xff]
    %227 = vmatprep.subr.mxu0 0.0
    %228 = vmatpush1.msra.mxu0 %v211
    %229 = vmatprep.subr.mxu0 0.0
    %230 = vmatpush1.msra.mxu0 %v212
    %231 = vmatprep.subr.mxu0 0.0
    %232 = vmatpush1.msra.mxu0 %v213
    %233 = vmatprep.subr.mxu0 0.0
    %234 = vmatpush1.msra.mxu0 %v214
    %235 = vmatprep.subr.mxu0 0.0
    %236 = vmatpush1.msra.mxu0 %v215
    %237 = vmatprep.subr.mxu0 0.0
    %238 = vmatpush1.msra.mxu0 %v216
    %239 = vmatprep.subr.mxu0 0.0
    %240 = vmatpush1.msra.mxu0 %v217
    %241 = vmatprep.subr.mxu0 0.0
    %242 = vmatpush1.msra.mxu0 %v218
    %243 = vmatprep.subr.mxu0 0.0
    %244 = vmatpush1.msra.mxu0 %v219
    %245 = vmatprep.subr.mxu0 0.0
    %246 = vmatpush1.msra.mxu0 %v220
    %247 = vmatprep.subr.mxu0 0.0
    %248 = vmatpush1.msra.mxu0 %v221
    %249 = vmatprep.subr.mxu0 0.0
    %250 = vmatpush1.msra.mxu0 %v222
    %251 = vmatprep.subr.mxu0 0.0
    %252 = vmatpush1.msra.mxu0 %v223
    %253 = vmatprep.subr.mxu0 0.0
    %254 = vmatpush1.msra.mxu0 %v224
    %255 = vmatprep.subr.mxu0 0.0
    %256 = vmatpush1.msra.mxu0 %v225
    %257 = vmatprep.subr.mxu0 0.0
    %258 = vmatpush1.msra.mxu0 %v226
    %259 = vmatprep.subr.mxu0 0.0
    %260 = vmatpush1.msra.mxu0 0.0
    %261 = vmatprep.subr.mxu0 0.0
    %262 = vmatpush1.msra.mxu0 0.0
    %263 = vmatprep.subr.mxu0 0.0
    %264 = vmatpush1.msra.mxu0 0.0
    %265 = vmatprep.subr.mxu0 0.0
    %266 = vmatpush1.msra.mxu0 0.0
    %267 = vmatprep.subr.mxu0 0.0
    %268 = vmatpush1.msra.mxu0 0.0
    %269 = vmatprep.subr.mxu0 0.0
    %270 = vmatpush1.msra.mxu0 0.0
    %271 = vmatprep.subr.mxu0 0.0
    %272 = vmatpush1.msra.mxu0 0.0
    %273 = vmatprep.subr.mxu0 0.0
    %274 = vmatpush1.msra.mxu0 0.0
    %275 = vmatprep.subr.mxu0 0.0
    %276 = vmatpush1.msra.mxu0 0.0
    %277 = vmatprep.subr.mxu0 0.0
    %278 = vmatpush1.msra.mxu0 0.0
    %279 = vmatprep.subr.mxu0 0.0
    %280 = vmatpush1.msra.mxu0 0.0
    %281 = vmatprep.subr.mxu0 0.0
    %282 = vmatpush1.msra.mxu0 0.0
    %283 = vmatprep.subr.mxu0 0.0
    %284 = vmatpush1.msra.mxu0 0.0
    %285 = vmatprep.subr.mxu0 0.0
    %286 = vmatpush1.msra.mxu0 0.0
    %287 = vmatprep.subr.mxu0 0.0
    %288 = vmatpush1.msra.mxu0 0.0
    %289 = vmatprep.subr.mxu0 0.0
    %290 = vmatpush1.msra.mxu0 0.0
    %291 = vmatprep.mubr.f32.mxu0 0.0
    %292 = vmatmul.mubr.f32.gmra.mrb[0].mxu0 %v210
    %v293 = vpop.f32.mrb[0].mxu0
    %v294 = vadd.f32 0.0, %v293
    %v295 = vpop.f32.mrb[0].mxu0
    %296 = vdwg.mxu0
    %v297 = vmul.f32 %v294, 0.001953125
    %v298 = vmul.f32 %v297, %v297
    %v300 = vrot.slane %v298, 7
    %v302 = vsub.f32 %v297, %v300
    %v303 = vld [vmem:[%s3] sm:$0x1]
    %v304 = vadd.f32 %v302, 1e-05
    %v305 = vrsqrt.pop %v304
    %v308 = vunpack.c.l.s4 1966171168
    %v309 = vunpack.c.0.s8 %v308
    %v310 = vlaneseq
    %v311 = vshrl.u32 %v310, 7
    %v312 = vsub.s32 %v309, %v311
    %v313 = vrot.slane %v305, %v312
    %v314 = vcombine.high %v313, %v313
    %v316 = vunpack.c.l.s4 1966171168
    %v317 = vunpack.c.0.s8 %v316
    %v318 = vlaneseq
    %v319 = vshrl.u32 %v318, 7
    %v320 = vsub.s32 %v317, %v319
    %v321 = vrot.slane %v314, %v320
    %v323 = vmul.f32 %v303, %v321
    %v324 = vld [vmem:[%s4] sm:$0x1]
    %v325 = vmul.f32 %v297, %v323
    %v326 = vsub.f32 %v324, %v325
    %v328 = vlaneseq
    %v329 = vshrl.u32 %v328, 7
    %v330 = vsub.s32 0, %v329
    %v331 = vrot.slane %v323, %v330
    %v333 = vmul.f32 %v169, %v331
    %v334 = vmul.f32 %v174, %v331
    %v335 = vmul.f32 %v179, %v331
    %v336 = vmul.f32 %v184, %v331
    %v338 = vlaneseq
    %v339 = vshrl.u32 %v338, 7
    %v340 = vsub.s32 0, %v339
    %v341 = vrot.slane %v326, %v340
    %v343 = vadd.f32 %v333, %v341
    %v344 = vadd.f32 %v334, %v341
    %v345 = vadd.f32 %v335, %v341
    %v346 = vadd.f32 %v336, %v341
    %v347 = vmax.f32 %v343, 0.0
    %v348 = vmax.f32 %v344, 0.0
    %v349 = vmax.f32 %v345, 0.0
    %v350 = vmax.f32 %v346, 0.0
    %351 = vst [vmem:[#allocation8] sm:$0xff] %v347
    %352 = vst [vmem:[#allocation8 + $0x8] sm:$0xff] %v348
    %353 = vst [vmem:[#allocation8 + $0x10] sm:$0xff] %v349
    %354 = vst [vmem:[#allocation8 + $0x18] sm:$0xff] %v350
    // Predicated region
    $region34: #{tpu_custom_call.1} parent=1 // pred_check
      _
    $region35: #{tpu_custom_call.1} parent=1 // pred_check_branch
      %356 = sbr.rel (0) target = $region37
    $region36: #{tpu_custom_call.1} parent=1 // pred_region
      %s358 = ssub.s32 512, 512
      %359 = vsyncadd [#allocation4], %s358
      %s360 = sshll.u32 [#allocation8], 4
      %s361 = int_to_ptr.vmem [resolvable:$true] %s360
      %366 = dma.vmem_to_hbm [thread:$0]  %s361, 512, %s5, [#allocation4], 128, 128, 8
    $region37: #{tpu_custom_call.1} parent=1 // pred_fallthru
      _
    // Predicated region
    $region38: #{tpu_custom_call.1} parent=1 // pred_check
      _
    $region39: #{tpu_custom_call.1} parent=1 // pred_check_branch
      %368 = sbr.rel (0) target = $region41
    $region40: #{tpu_custom_call.1} parent=1 // pred_region
      %369 = dma.done [#allocation4], 512
    $region41: #{tpu_custom_call.1} parent=1 // pred_fallthru
      _
    %370 = vsyncpa [#allocation3], 1
    %371 = vsyncpa [#allocation6], 1
    %372 = vsyncpa [#allocation4], 1

</llo_original>
